<compile_context>
chip_gen: v6e
topology: v6e:2x2x1
jax: 0.10.0
libtpu: 0.0.40
codegen_flags: <defaults>
</compile_context>

<pallas_src>
import math

import jax
import jax.numpy as jnp
from jax import lax
from jax.experimental import pallas as pl
from jax.experimental.pallas import tpu as pltpu

_S_SCALE = 64.0          # the module hard-codes `output *= 64`
_NORM_EPS = 1e-12        # F.normalize default eps


def _arcface_kernel(x_ref, w_ref, o_ref):
    x = x_ref[...].astype(jnp.float32)      # (bt, D)
    w = w_ref[...].astype(jnp.float32)      # (ct, D)

    eps2 = jnp.float32(_NORM_EPS * _NORM_EPS)

    # Row scale for x: s / max(||x||, eps).  rsqrt rides the EUP slot (no
    # vector divide); the *64 is folded into this single multiply.
    x_inv = lax.rsqrt(jnp.maximum(jnp.sum(x * x, axis=-1, keepdims=True), eps2))
    x_scaled = x * (jnp.float32(_S_SCALE) * x_inv)

    # Row scale for w: 1 / max(||w||, eps).  (ct, 1) broadcast over rows is a
    # cheap sublane broadcast — no transpose / relayout needed.
    w_inv = lax.rsqrt(jnp.maximum(jnp.sum(w * w, axis=-1, keepdims=True), eps2))
    w_scaled = w * w_inv

    # Contract over the shared last dim of both operands directly; the MXU
    # consumes the (ct, D) weight tile in its natural row-major layout.
    o_ref[...] = lax.dot_general(
        x_scaled, w_scaled,
        dimension_numbers=(((1,), (1,)), ((), ())),
        preferred_element_type=jnp.float32,
    ).astype(o_ref.dtype)


def _pick_tile(dim, pref, align):
    """Largest multiple of `align` that divides `dim` and is <= pref; else full dim."""
    best = None
    t = align
    while t <= min(dim, pref):
        if dim % t == 0:
            best = t
        t += align
    return best if best is not None else dim


def arcface_forward(x, weight, label=None):
    """x: (B, in_features) f32, weight: (out_features, in_features) f32,
    label: (B,) int (accepted but unused — the one-hot blend is the identity).
    Returns (B, out_features) f32 = 64 * normalize(x) @ normalize(weight).T."""
    del label  # dead in the forward pass of the reference module
    B, D = x.shape
    C, D2 = weight.shape
    assert D == D2, "in_features mismatch between input and weight"

    # Tile batch and class dims; keep D un-tiled inside the block.
    bt = _pick_tile(B, 256, 8)      # sublane-aligned batch tile
    ct = _pick_tile(C, 512, 128)    # lane-dense class tile (multiple of 128)
    grid = (B // bt, C // ct)

    return pl.pallas_call(
        _arcface_kernel,
        out_shape=jax.ShapeDtypeStruct((B, C), jnp.float32),
        grid_spec=pl.GridSpec(
            grid=grid,
            in_specs=[
                pl.BlockSpec((bt, D), lambda i, j: (i, 0)),   # x rows
                pl.BlockSpec((ct, D), lambda i, j: (j, 0)),   # weight rows (streamed)
            ],
            out_specs=pl.BlockSpec((bt, ct), lambda i, j: (i, j)),
        ),
        compiler_params=pltpu.CompilerParams(
            dimension_semantics=("parallel", "parallel"),
            vmem_limit_bytes=32 * 1024 * 1024,
        ),
    )(x, weight)


if __name__ == "__main__":
    # Small shapes consistent with the module: batch=8, in_features=32, out_features=128.
    B, IN_FEATURES, OUT_FEATURES = 8, 32, 128

    key = jax.random.PRNGKey(0)
    k_x, k_w, k_lbl = jax.random.split(key, 3)

    # Deterministic xavier_uniform_-style init for the weight (out_features, in_features).
    limit = math.sqrt(6.0 / (IN_FEATURES + OUT_FEATURES))
    weight = jax.random.uniform(
        k_w, (OUT_FEATURES, IN_FEATURES), dtype=jnp.float32,
        minval=-limit, maxval=limit)

    x = jax.random.normal(k_x, (B, IN_FEATURES), dtype=jnp.float32)
    label = jax.random.randint(k_lbl, (B,), 0, OUT_FEATURES, dtype=jnp.int32)

    out = jax.block_until_ready(arcface_forward(x, weight, label))

    # Reference check in plain JAX (matches the PyTorch forward exactly).
    xn = x / jnp.maximum(jnp.linalg.norm(x, axis=-1, keepdims=True), 1e-12)
    wn = weight / jnp.maximum(jnp.linalg.norm(weight, axis=-1, keepdims=True), 1e-12)
    ref = 64.0 * (xn @ wn.T)
    assert out.shape == (B, OUT_FEATURES)
    assert jnp.allclose(out, ref, atol=1e-4, rtol=1e-4)

    print("KERNEL_OK")
</pallas_src>

<mosaic_0001>
module attributes {stable_mosaic.version = 11 : i64} {
  func.func @_arcface_kernel(%arg0: i32, %arg1: i32, %arg2: memref<8x32xf32, #tpu.memory_space<vmem>>, %arg3: memref<128x32xf32, #tpu.memory_space<vmem>>, %arg4: memref<8x128xf32, #tpu.memory_space<vmem>>) attributes {dimension_semantics = [#tpu.dimension_semantics<parallel>, #tpu.dimension_semantics<parallel>], iteration_bounds = array<i64: 1, 1>, scalar_prefetch = 0 : i64, scratch_operands = 0 : i64, tpu.core_type = #tpu.core_type<tc>, window_params = [{transform_indices = @transform_0, window_bounds = array<i64: 8, 32>}, {transform_indices = @transform_1, window_bounds = array<i64: 128, 32>}, {transform_indices = @transform_2, window_bounds = array<i64: 8, 128>}]} {
    %c0 = arith.constant 0 : index
    %c0_0 = arith.constant 0 : index
    %0 = vector.load %arg2[%c0, %c0_0] : memref<8x32xf32, #tpu.memory_space<vmem>>, vector<8x32xf32>
    %c0_1 = arith.constant 0 : index
    %c0_2 = arith.constant 0 : index
    %1 = vector.load %arg3[%c0_1, %c0_2] : memref<128x32xf32, #tpu.memory_space<vmem>>, vector<128x32xf32>
    %2 = arith.mulf %0, %0 : vector<8x32xf32>
    %cst = arith.constant dense<0.000000e+00> : vector<8xf32>
    %3 = vector.multi_reduction <add>, %2, %cst [1] : vector<8x32xf32> to vector<8xf32>
    %4 = vector.shape_cast %3 : vector<8xf32> to vector<8x1xf32>
    %cst_3 = arith.constant 1.000000e-24 : f32
    %5 = vector.broadcast %cst_3 : f32 to vector<8x1xf32>
    %6 = arith.maximumf %4, %5 : vector<8x1xf32>
    %7 = math.rsqrt %6 : vector<8x1xf32>
    %cst_4 = arith.constant 6.400000e+01 : f32
    %8 = vector.broadcast %cst_4 : f32 to vector<8x1xf32>
    %9 = arith.mulf %8, %7 : vector<8x1xf32>
    %10 = vector.broadcast %9 : vector<8x1xf32> to vector<8x32xf32>
    %11 = arith.mulf %0, %10 : vector<8x32xf32>
    %12 = arith.mulf %1, %1 : vector<128x32xf32>
    %cst_5 = arith.constant dense<0.000000e+00> : vector<128xf32>
    %13 = vector.multi_reduction <add>, %12, %cst_5 [1] : vector<128x32xf32> to vector<128xf32>
    %14 = vector.shape_cast %13 : vector<128xf32> to vector<128x1xf32>
    %cst_6 = arith.constant 1.000000e-24 : f32
    %15 = vector.broadcast %cst_6 : f32 to vector<128x1xf32>
    %16 = arith.maximumf %14, %15 : vector<128x1xf32>
    %17 = math.rsqrt %16 : vector<128x1xf32>
    %18 = vector.broadcast %17 : vector<128x1xf32> to vector<128x32xf32>
    %19 = arith.mulf %1, %18 : vector<128x32xf32>
    %cst_7 = arith.constant dense<0.000000e+00> : vector<8x128xf32>
    %20 = tpu.matmul %11, %19, %cst_7 {dimension_numbers = #tpu.dot_dimension_numbers<[1], [1], [0], [0], [0, 0, 1, 0], [], []>} : vector<8x32xf32>, vector<128x32xf32>, vector<8x128xf32> -> vector<8x128xf32>
    %c0_8 = arith.constant 0 : index
    %c0_9 = arith.constant 0 : index
    %21 = vector.load %arg4[%c0_8, %c0_9] : memref<8x128xf32, #tpu.memory_space<vmem>>, vector<8x128xf32>
    tpu.vector_store %arg4[%c0_8, %c0_9], %20 {strides = array<i32>} : memref<8x128xf32, #tpu.memory_space<vmem>>, vector<8x128xf32>,
    return
  }
  func.func @transform_0(%arg0: i32, %arg1: i32) -> (i32, i32) {
    %c0_i32 = arith.constant 0 : i32
    %c0_i32_0 = arith.constant 0 : i32
    return %arg0, %c0_i32 : i32, i32
  }
  func.func @transform_1(%arg0: i32, %arg1: i32) -> (i32, i32) {
    %c0_i32 = arith.constant 0 : i32
    %c0_i32_0 = arith.constant 0 : i32
    return %arg1, %c0_i32 : i32, i32
  }
  func.func @transform_2(%arg0: i32, %arg1: i32) -> (i32, i32) {
    %c0_i32 = arith.constant 0 : i32
    return %arg0, %arg1 : i32, i32
  }
}

</mosaic_0001>

<llo_original>
// kernel: tpu_custom_call.1
$region0: #{tpu_custom_call.1}
  #allocation0 [shape = 'u32[]', space=smem, size = 0x4, offset = 0x4, fixed_abs, tag = 'smem constant byte address 0x4 - core index']
  #allocation1 [shape = 'u32[144,128]{1,0:T(1,128)}', space=vmem, size = 0x12000, scoped, tag = 'internal scratch']
  %s0 = inlined_call_operand.vmem [shape: f32[8,32], index: 0, kind: input, shape index: {}]
  %s1 = inlined_call_operand.vmem [shape: f32[128,32], index: 1, kind: input, shape index: {}]
  %s2 = inlined_call_operand.hbm [shape: f32[8,128], index: 2, kind: output, shape index: {}]
  %s3 = sld [smem:[#allocation0]]
  $region18: #{tpu_custom_call.1} parent=0
    _
  %s5 = ssub.s32 1, %s3
  %s6 = scalar_select 0, %s5, %s3
  $region1: #{tpu_custom_call.1} parent=0
    #allocation2 [shape = 'u8[4096]{0}', space=vmem, size = 0x1000, scoped, tag = 'output window, operand 0, single buffered']
    #allocation3 [shape = 's32[1]{0}', space=sflag, size = 0x4, scoped, tag = 'scoped memory for tpu_custom_call.1']
    %7 = vsyncpa [#allocation3], 0
    // Predicated region
    $region2: #{tpu_custom_call.1} parent=1 // pred_check
      _
    $region3: #{tpu_custom_call.1} parent=1 // pred_check_branch
      %9 = sbr.rel (0) target = $region5
    $region4: #{tpu_custom_call.1} parent=1 // pred_region
      _
    $region5: #{tpu_custom_call.1} parent=1 // pred_fallthru
      _
    // Predicated region
    $region6: #{tpu_custom_call.1} parent=1 // pred_check
      _
    $region7: #{tpu_custom_call.1} parent=1 // pred_check_branch
      %11 = sbr.rel (0) target = $region9
    $region8: #{tpu_custom_call.1} parent=1 // pred_region
      _
    $region9: #{tpu_custom_call.1} parent=1 // pred_fallthru
      _
    %v12 = vld [vmem:[%s0] sm:$0xff]
    %v13 = vld [vmem:[%s1] sm:$0xff]
    %v14 = vld [vmem:[%s1 + $0x8] sm:$0xff]
    %v15 = vld [vmem:[%s1 + $0x10] sm:$0xff]
    %v16 = vld [vmem:[%s1 + $0x18] sm:$0xff]
    %v17 = vld [vmem:[%s1 + $0x20] sm:$0xff]
    %v18 = vld [vmem:[%s1 + $0x28] sm:$0xff]
    %v19 = vld [vmem:[%s1 + $0x30] sm:$0xff]
    %v20 = vld [vmem:[%s1 + $0x38] sm:$0xff]
    %v21 = vld [vmem:[%s1 + $0x40] sm:$0xff]
    %v22 = vld [vmem:[%s1 + $0x48] sm:$0xff]
    %v23 = vld [vmem:[%s1 + $0x50] sm:$0xff]
    %v24 = vld [vmem:[%s1 + $0x58] sm:$0xff]
    %v25 = vld [vmem:[%s1 + $0x60] sm:$0xff]
    %v26 = vld [vmem:[%s1 + $0x68] sm:$0xff]
    %v27 = vld [vmem:[%s1 + $0x70] sm:$0xff]
    %v28 = vld [vmem:[%s1 + $0x78] sm:$0xff]
    %v29 = vmul.f32 %v12, %v12
    %vm30 = vcmask 261120
    %v31 = vsel %vm30, %v29, 0.0
    %32 = vadd.xlane.f32.xlu0 %v31
    %v33 = vpop.xlane.xlu0 %32
    %v34 = vmax.f32 %v33, 1e-24
    %v35 = vrsqrt.pop %v34
    %v36 = vmul.f32 %v35, 64.0
    %v37 = vmul.f32 %v12, %v36
    %v38 = vmul.f32 %v13, %v13
    %v39 = vmul.f32 %v14, %v14
    %v40 = vmul.f32 %v15, %v15
    %v41 = vmul.f32 %v16, %v16
    %v42 = vmul.f32 %v17, %v17
    %v43 = vmul.f32 %v18, %v18
    %v44 = vmul.f32 %v19, %v19
    %v45 = vmul.f32 %v20, %v20
    %v46 = vmul.f32 %v21, %v21
    %v47 = vmul.f32 %v22, %v22
    %v48 = vmul.f32 %v23, %v23
    %v49 = vmul.f32 %v24, %v24
    %v50 = vmul.f32 %v25, %v25
    %v51 = vmul.f32 %v26, %v26
    %v52 = vmul.f32 %v27, %v27
    %v53 = vmul.f32 %v28, %v28
    %v54 = vsel %vm30, %v38, 0.0
    %55 = vadd.xlane.f32.xlu0 %v54
    %v56 = vpop.xlane.xlu0 %55
    %v57 = vsel %vm30, %v39, 0.0
    %58 = vadd.xlane.f32.xlu0 %v57
    %v59 = vpop.xlane.xlu0 %58
    %v60 = vsel %vm30, %v40, 0.0
    %61 = vadd.xlane.f32.xlu0 %v60
    %v62 = vpop.xlane.xlu0 %61
    %v63 = vsel %vm30, %v41, 0.0
    %64 = vadd.xlane.f32.xlu0 %v63
    %v65 = vpop.xlane.xlu0 %64
    %v66 = vsel %vm30, %v42, 0.0
    %67 = vadd.xlane.f32.xlu0 %v66
    %v68 = vpop.xlane.xlu0 %67
    %v69 = vsel %vm30, %v43, 0.0
    %70 = vadd.xlane.f32.xlu0 %v69
    %v71 = vpop.xlane.xlu0 %70
    %v72 = vsel %vm30, %v44, 0.0
    %73 = vadd.xlane.f32.xlu0 %v72
    %v74 = vpop.xlane.xlu0 %73
    %v75 = vsel %vm30, %v45, 0.0
    %76 = vadd.xlane.f32.xlu0 %v75
    %v77 = vpop.xlane.xlu0 %76
    %v78 = vsel %vm30, %v46, 0.0
    %79 = vadd.xlane.f32.xlu0 %v78
    %v80 = vpop.xlane.xlu0 %79
    %v81 = vsel %vm30, %v47, 0.0
    %82 = vadd.xlane.f32.xlu0 %v81
    %v83 = vpop.xlane.xlu0 %82
    %v84 = vsel %vm30, %v48, 0.0
    %85 = vadd.xlane.f32.xlu0 %v84
    %v86 = vpop.xlane.xlu0 %85
    %v87 = vsel %vm30, %v49, 0.0
    %88 = vadd.xlane.f32.xlu0 %v87
    %v89 = vpop.xlane.xlu0 %88
    %v90 = vsel %vm30, %v50, 0.0
    %91 = vadd.xlane.f32.xlu0 %v90
    %v92 = vpop.xlane.xlu0 %91
    %v93 = vsel %vm30, %v51, 0.0
    %94 = vadd.xlane.f32.xlu0 %v93
    %v95 = vpop.xlane.xlu0 %94
    %v96 = vsel %vm30, %v52, 0.0
    %97 = vadd.xlane.f32.xlu0 %v96
    %v98 = vpop.xlane.xlu0 %97
    %v99 = vsel %vm30, %v53, 0.0
    %100 = vadd.xlane.f32.xlu0 %v99
    %v101 = vpop.xlane.xlu0 %100
    %v102 = vmax.f32 %v56, 1e-24
    %v103 = vmax.f32 %v59, 1e-24
    %v104 = vmax.f32 %v62, 1e-24
    %v105 = vmax.f32 %v65, 1e-24
    %v106 = vmax.f32 %v68, 1e-24
    %v107 = vmax.f32 %v71, 1e-24
    %v108 = vmax.f32 %v74, 1e-24
    %v109 = vmax.f32 %v77, 1e-24
    %v110 = vmax.f32 %v80, 1e-24
    %v111 = vmax.f32 %v83, 1e-24
    %v112 = vmax.f32 %v86, 1e-24
    %v113 = vmax.f32 %v89, 1e-24
    %v114 = vmax.f32 %v92, 1e-24
    %v115 = vmax.f32 %v95, 1e-24
    %v116 = vmax.f32 %v98, 1e-24
    %v117 = vmax.f32 %v101, 1e-24
    %v118 = vrsqrt.pop %v102
    %v119 = vrsqrt.pop %v103
    %v120 = vrsqrt.pop %v104
    %v121 = vrsqrt.pop %v105
    %v122 = vrsqrt.pop %v106
    %v123 = vrsqrt.pop %v107
    %v124 = vrsqrt.pop %v108
    %v125 = vrsqrt.pop %v109
    %v126 = vrsqrt.pop %v110
    %v127 = vrsqrt.pop %v111
    %v128 = vrsqrt.pop %v112
    %v129 = vrsqrt.pop %v113
    %v130 = vrsqrt.pop %v114
    %v131 = vrsqrt.pop %v115
    %v132 = vrsqrt.pop %v116
    %v133 = vrsqrt.pop %v117
    %v134 = vmul.f32 %v13, %v118
    %v135 = vmul.f32 %v14, %v119
    %v136 = vmul.f32 %v15, %v120
    %v137 = vmul.f32 %v16, %v121
    %v138 = vmul.f32 %v17, %v122
    %v139 = vmul.f32 %v18, %v123
    %v140 = vmul.f32 %v19, %v124
    %v141 = vmul.f32 %v20, %v125
    %v142 = vmul.f32 %v21, %v126
    %v143 = vmul.f32 %v22, %v127
    %v144 = vmul.f32 %v23, %v128
    %v145 = vmul.f32 %v24, %v129
    %v146 = vmul.f32 %v25, %v130
    %v147 = vmul.f32 %v26, %v131
    %v148 = vmul.f32 %v27, %v132
    %v149 = vmul.f32 %v28, %v133
    %v151 = vsel %vm30, %v37, 0
    %v154 = vsel %vm30, %v134, 0
    %v157 = vsel %vm30, %v135, 0
    %v160 = vsel %vm30, %v136, 0
    %v163 = vsel %vm30, %v137, 0
    %v166 = vsel %vm30, %v138, 0
    %v169 = vsel %vm30, %v139, 0
    %v172 = vsel %vm30, %v140, 0
    %v175 = vsel %vm30, %v141, 0
    %v178 = vsel %vm30, %v142, 0
    %v181 = vsel %vm30, %v143, 0
    %v184 = vsel %vm30, %v144, 0
    %v187 = vsel %vm30, %v145, 0
    %v190 = vsel %vm30, %v146, 0
    %v193 = vsel %vm30, %v147, 0
    %v196 = vsel %vm30, %v148, 0
    %v199 = vsel %vm30, %v149, 0
    %201 = vmatprep.subr.mxu0 0.0
    %202 = vmatpush1.xpose.msra.mxu0 %v199
    %203 = vmatprep.subr.mxu0 0.0
    %204 = vmatpush1.xpose.msra.mxu0 %v196
    %205 = vmatprep.subr.mxu0 0.0
    %206 = vmatpush1.xpose.msra.mxu0 %v193
    %207 = vmatprep.subr.mxu0 0.0
    %208 = vmatpush1.xpose.msra.mxu0 %v190
    %209 = vmatprep.subr.mxu0 0.0
    %210 = vmatpush1.xpose.msra.mxu0 %v187
    %211 = vmatprep.subr.mxu0 0.0
    %212 = vmatpush1.xpose.msra.mxu0 %v184
    %213 = vmatprep.subr.mxu0 0.0
    %214 = vmatpush1.xpose.msra.mxu0 %v181
    %215 = vmatprep.subr.mxu0 0.0
    %216 = vmatpush1.xpose.msra.mxu0 %v178
    %217 = vmatprep.subr.mxu0 0.0
    %218 = vmatpush1.xpose.msra.mxu0 %v175
    %219 = vmatprep.subr.mxu0 0.0
    %220 = vmatpush1.xpose.msra.mxu0 %v172
    %221 = vmatprep.subr.mxu0 0.0
    %222 = vmatpush1.xpose.msra.mxu0 %v169
    %223 = vmatprep.subr.mxu0 0.0
    %224 = vmatpush1.xpose.msra.mxu0 %v166
    %225 = vmatprep.subr.mxu0 0.0
    %226 = vmatpush1.xpose.msra.mxu0 %v163
    %227 = vmatprep.subr.mxu0 0.0
    %228 = vmatpush1.xpose.msra.mxu0 %v160
    %229 = vmatprep.subr.mxu0 0.0
    %230 = vmatpush1.xpose.msra.mxu0 %v157
    %231 = vmatprep.subr.mxu0 0.0
    %232 = vmatpush1.xpose.msra.mxu0 %v154
    %233 = vmatprep.subr.mxu0 0.0
    %234 = vmatpush2.xpose.msra.mxu0 0.0
    %235 = vmatprep.subr.mxu0 0.0
    %236 = vmatpush2.xpose.msra.mxu0 0.0
    %237 = vmatprep.subr.mxu0 0.0
    %238 = vmatpush2.xpose.msra.mxu0 0.0
    %239 = vmatprep.subr.mxu0 0.0
    %240 = vmatpush2.xpose.msra.mxu0 0.0
    %241 = vmatprep.subr.mxu0 0.0
    %242 = vmatpush2.xpose.msra.mxu0 0.0
    %243 = vmatprep.subr.mxu0 0.0
    %244 = vmatpush2.xpose.msra.mxu0 0.0
    %245 = vmatprep.subr.mxu0 0.0
    %246 = vmatpush2.xpose.msra.mxu0 0.0
    %247 = vmatprep.subr.mxu0 0.0
    %248 = vmatpush2.xpose.msra.mxu0 0.0
    %249 = vmatprep.subr.mxu0 0.0
    %250 = vmatpush2.xpose.msra.mxu0 0.0
    %251 = vmatprep.subr.mxu0 0.0
    %252 = vmatpush2.xpose.msra.mxu0 0.0
    %253 = vmatprep.subr.mxu0 0.0
    %254 = vmatpush2.xpose.msra.mxu0 0.0
    %255 = vmatprep.subr.mxu0 0.0
    %256 = vmatpush2.xpose.msra.mxu0 0.0
    %257 = vmatprep.subr.mxu0 0.0
    %258 = vmatpush2.xpose.msra.mxu0 0.0
    %259 = vmatprep.subr.mxu0 0.0
    %260 = vmatpush2.xpose.msra.mxu0 0.0
    %261 = vmatprep.subr.mxu0 0.0
    %262 = vmatpush2.xpose.msra.mxu0 0.0
    %263 = vmatprep.subr.mxu0 0.0
    %264 = vmatpush2.xpose.msra.mxu0 0.0
    %265 = vmatprep.mubr.f32.mxu0 0.0
    %266 = vmatmul.mubr.f32.gmra.mxu0 %v151
    %v267 = vpop.f32.mrf.mxu0
    %v268 = vadd.f32 0.0, %v267
    %v269 = vpop.f32.mrf.mxu0
    %270 = vdwg.mxu0
    %271 = vst [vmem:[#allocation2] sm:$0xff] %v268
    // Predicated region
    $region10: #{tpu_custom_call.1} parent=1 // pred_check
      _
    $region11: #{tpu_custom_call.1} parent=1 // pred_check_branch
      %273 = sbr.rel (0) target = $region13
    $region12: #{tpu_custom_call.1} parent=1 // pred_region
      %s275 = ssub.s32 128, 128
      %276 = vsyncadd [#allocation3], %s275
      %s278 = sshll.u32 [#allocation2], 4
      %s279 = int_to_ptr.vmem [resolvable:$true] %s278
      %281 = dma.vmem_to_hbm [thread:$0]  %s279, 128, %s2, [#allocation3]
    $region13: #{tpu_custom_call.1} parent=1 // pred_fallthru
      _
    // Predicated region
    $region14: #{tpu_custom_call.1} parent=1 // pred_check
      _
    $region15: #{tpu_custom_call.1} parent=1 // pred_check_branch
      %283 = sbr.rel (0) target = $region17
    $region16: #{tpu_custom_call.1} parent=1 // pred_region
      %284 = dma.done [#allocation3], 128
    $region17: #{tpu_custom_call.1} parent=1 // pred_fallthru
      _
    %285 = vsyncpa [#allocation3], 1

</llo_original>
